<compile_context>
chip_gen: v7x
topology: tpu7x:2x2x1
jax: 0.10.0
libtpu: 0.0.40
codegen_flags: <defaults>
</compile_context>

<pallas_src>
import functools

import jax
import jax.numpy as jnp
from jax import lax
from jax.experimental import pallas as pl
from jax.experimental.pallas import tpu as pltpu

LANE = 128


def _round_up(x, m):
    return (x + m - 1) // m * m


def _critic_kernel(state_ref, action_ref,
                   w1s_ref, w1a_ref, b1_ref,
                   w2_ref, b2_ref,
                   wqt_ref, bq_ref,
                   q_ref):
    # Cast activations to bf16 in-kernel (VPU, free) so the MXU runs bf16 with
    # f32 accumulation; biases stay f32.
    s = state_ref[...].astype(jnp.bfloat16)
    a = action_ref[...].astype(jnp.bfloat16)

    # fc1 over the (virtual) concatenation [state, action]:
    #   cat(s, a) @ W1 == s @ W1[:in_dims] + a @ W1[in_dims:]
    h1 = (jnp.dot(s, w1s_ref[...], preferred_element_type=jnp.float32)
          + jnp.dot(a, w1a_ref[...], preferred_element_type=jnp.float32)
          + b1_ref[...])
    h1 = jnp.maximum(h1, 0.0).astype(jnp.bfloat16)

    # fc2 + relu
    h2 = (jnp.dot(h1, w2_ref[...], preferred_element_type=jnp.float32)
          + b2_ref[...])
    h2 = jnp.maximum(h2, 0.0).astype(jnp.bfloat16)

    # q head: contract the feature dim of both operands so the result is
    # (1, tb) with the batch on the LANE axis -> lane-dense store, no padded
    # writeback and no in-kernel relayout/transpose needed.
    q_row = lax.dot_general(
        wqt_ref[...], h2,
        dimension_numbers=(((1,), (1,)), ((), ())),
        preferred_element_type=jnp.float32)
    q_ref[...] = q_row + bq_ref[...]          # (1,1) bias lane-broadcasts


def _choose_tile(batch, tile_b):
    """Small batches: one exact full-array block (grid=1).  Larger batches:
    big 256-aligned tile, capped so the grid has >= 2 steps (keeps both
    TensorCores busy on v7x; harmless on v5e/v6e)."""
    if batch <= 256:
        return batch, 1
    tb = min(tile_b, _round_up(pl.cdiv(batch, 2), 256))
    return tb, pl.cdiv(batch, tb)


@functools.partial(jax.jit, static_argnames=("tile_b",))
def critic_forward(state, action, params, *, tile_b=2048):
    """state: [B, input_dims] f32, action: [B, all_actions] f32 -> q: [B, 1] f32."""
    w1s, w1a, b1, w2, b2, wqt, bq = params
    B, in_dims = state.shape
    act_dims = action.shape[1]

    tb, steps = _choose_tile(B, tile_b)
    Bp = steps * tb                       # output width (>= B); extra lanes sliced off

    def batch_spec(feat):
        return pl.BlockSpec((tb, feat), lambda i: (i, 0))

    def resident_spec(arr):
        # Constant block index -> tile stays VMEM-resident across the batch loop.
        return pl.BlockSpec(arr.shape, lambda i: (0, 0))

    q_row = pl.pallas_call(
        _critic_kernel,
        out_shape=jax.ShapeDtypeStruct((1, Bp), jnp.float32),
        grid=(steps,),
        in_specs=[batch_spec(in_dims), batch_spec(act_dims),
                  resident_spec(w1s), resident_spec(w1a), resident_spec(b1),
                  resident_spec(w2), resident_spec(b2),
                  resident_spec(wqt), resident_spec(bq)],
        out_specs=pl.BlockSpec((1, tb), lambda i: (0, i)),
        compiler_params=pltpu.CompilerParams(
            dimension_semantics=("parallel",),
        ),
    )(state, action, w1s, w1a, b1, w2, b2, wqt, bq)

    # First B lanes are the real q values (tiny slice, 4 B/row).
    return q_row[0, :B][:, None]


def init_params(key, input_dims, all_actions, fc1_dims, fc2_dims):
    """PyTorch nn.Linear-style init (U[-1/sqrt(fan_in), +]).  fc1's weight is
    split for the concat-fusion; output widths are zero-padded to multiples of
    128 (exact: padded weights/biases are zero).  The q head is stored
    TRANSPOSED as (1, fc2_p) so the kernel's dot_general emits a lane-major
    (1, tb) result."""
    ks = jax.random.split(key, 6)

    def lin(kw, kb, fan_in, fan_out):
        bound = 1.0 / jnp.sqrt(jnp.float32(fan_in))
        w = jax.random.uniform(kw, (fan_in, fan_out), jnp.float32, -bound, bound)
        b = jax.random.uniform(kb, (1, fan_out), jnp.float32, -bound, bound)
        return w, b

    w1, b1 = lin(ks[0], ks[1], input_dims + all_actions, fc1_dims)
    w2, b2 = lin(ks[2], ks[3], fc1_dims, fc2_dims)
    wq, bq = lin(ks[4], ks[5], fc2_dims, 1)

    fc1_p = _round_up(fc1_dims, LANE)
    fc2_p = _round_up(fc2_dims, LANE)

    def pad2(x, rows, cols):
        return jnp.zeros((rows, cols), x.dtype).at[:x.shape[0], :x.shape[1]].set(x)

    w1s = pad2(w1[:input_dims, :], input_dims, fc1_p).astype(jnp.bfloat16)
    w1a = pad2(w1[input_dims:, :], all_actions, fc1_p).astype(jnp.bfloat16)
    b1p = pad2(b1, 1, fc1_p)                                   # f32 bias
    w2p = pad2(w2, fc1_p, fc2_p).astype(jnp.bfloat16)
    b2p = pad2(b2, 1, fc2_p)
    wqt = pad2(wq.T, 1, fc2_p).astype(jnp.bfloat16)            # transposed q head
    bqp = bq.astype(jnp.float32)                               # (1, 1) f32
    return (w1s, w1a, b1p, w2p, b2p, wqt, bqp)


def reference_forward(state, action, params):
    """Pure-JAX f32 reference (padding is zero, so the result is exact)."""
    w1s, w1a, b1, w2, b2, wqt, bq = params
    w1 = jnp.concatenate([w1s, w1a], axis=0).astype(jnp.float32)
    x = jnp.concatenate([state, action], axis=1)
    h1 = jax.nn.relu(x @ w1 + b1)
    h2 = jax.nn.relu(h1 @ w2.astype(jnp.float32) + b2)
    q = h2 @ wqt.astype(jnp.float32).T + bq
    return q


if __name__ == "__main__":
    # Shapes consistent with CriticNetwork(beta, input_dims, fc1_dims,
    # fc2_dims, all_actions, ...).
    input_dims, all_actions = 16, 8
    fc1_dims, fc2_dims = 64, 32

    key = jax.random.PRNGKey(0)
    k_s, k_a, k_p, k_s2, k_a2 = jax.random.split(key, 5)
    params = init_params(k_p, input_dims, all_actions, fc1_dims, fc2_dims)

    # Small batch: single full-array block (grid = 1).
    batch = 8
    state = jax.random.normal(k_s, (batch, input_dims), jnp.float32)
    action = jax.random.normal(k_a, (batch, all_actions), jnp.float32)
    q = critic_forward(state, action, params)
    jax.block_until_ready(q)
    q_ref = reference_forward(state, action, params)
    assert q.shape == (batch, 1)
    assert q.dtype == jnp.float32
    # bf16 operands (f32 accumulation) -> loosened tolerance vs f32 reference.
    assert jnp.allclose(q, q_ref, atol=2e-2, rtol=2e-2), (q, q_ref)

    # Larger, non-tile-multiple batch: exercises the multi-step "parallel"
    # grid, the ragged boundary tile, and the lane-dense output path.
    batch2 = 600
    state2 = jax.random.normal(k_s2, (batch2, input_dims), jnp.float32)
    action2 = jax.random.normal(k_a2, (batch2, all_actions), jnp.float32)
    q2 = critic_forward(state2, action2, params)
    jax.block_until_ready(q2)
    q2_ref = reference_forward(state2, action2, params)
    assert q2.shape == (batch2, 1)
    assert q2.dtype == jnp.float32
    assert jnp.allclose(q2, q2_ref, atol=2e-2, rtol=2e-2)

    print("KERNEL_OK")
</pallas_src>

<mosaic_0001>
module attributes {stable_mosaic.version = 11 : i64} {
  func.func @_critic_kernel(%arg0: i32, %arg1: memref<8x16xf32, #tpu.memory_space<vmem>>, %arg2: memref<8x8xf32, #tpu.memory_space<vmem>>, %arg3: memref<16x128xbf16, #tpu.memory_space<vmem>>, %arg4: memref<8x128xbf16, #tpu.memory_space<vmem>>, %arg5: memref<1x128xf32, #tpu.memory_space<vmem>>, %arg6: memref<128x128xbf16, #tpu.memory_space<vmem>>, %arg7: memref<1x128xf32, #tpu.memory_space<vmem>>, %arg8: memref<1x128xbf16, #tpu.memory_space<vmem>>, %arg9: memref<1x1xf32, #tpu.memory_space<vmem>>, %arg10: memref<1x8xf32, #tpu.memory_space<vmem>>) attributes {dimension_semantics = [#tpu.dimension_semantics<parallel>], iteration_bounds = array<i64: 1>, scalar_prefetch = 0 : i64, scratch_operands = 0 : i64, tpu.core_type = #tpu.core_type<tc>, window_params = [{transform_indices = @transform_0, window_bounds = array<i64: 8, 16>}, {transform_indices = @transform_1, window_bounds = array<i64: 8, 8>}, {pipeline_mode = #tpu.pipeline_mode<synchronous>, transform_indices = @transform_2, window_bounds = array<i64: 16, 128>}, {pipeline_mode = #tpu.pipeline_mode<synchronous>, transform_indices = @transform_3, window_bounds = array<i64: 8, 128>}, {pipeline_mode = #tpu.pipeline_mode<synchronous>, transform_indices = @transform_4, window_bounds = array<i64: 1, 128>}, {pipeline_mode = #tpu.pipeline_mode<synchronous>, transform_indices = @transform_5, window_bounds = array<i64: 128, 128>}, {pipeline_mode = #tpu.pipeline_mode<synchronous>, transform_indices = @transform_6, window_bounds = array<i64: 1, 128>}, {pipeline_mode = #tpu.pipeline_mode<synchronous>, transform_indices = @transform_7, window_bounds = array<i64: 1, 128>}, {pipeline_mode = #tpu.pipeline_mode<synchronous>, transform_indices = @transform_8, window_bounds = array<i64: 1, 1>}, {transform_indices = @transform_9, window_bounds = array<i64: 1, 8>}]} {
    %c0 = arith.constant 0 : index
    %c0_0 = arith.constant 0 : index
    %0 = vector.load %arg1[%c0, %c0_0] : memref<8x16xf32, #tpu.memory_space<vmem>>, vector<8x16xf32>
    %1 = arith.truncf %0 : vector<8x16xf32> to vector<8x16xbf16>
    %c0_1 = arith.constant 0 : index
    %c0_2 = arith.constant 0 : index
    %2 = vector.load %arg2[%c0_1, %c0_2] : memref<8x8xf32, #tpu.memory_space<vmem>>, vector<8x8xf32>
    %3 = arith.truncf %2 : vector<8x8xf32> to vector<8x8xbf16>
    %c0_3 = arith.constant 0 : index
    %c0_4 = arith.constant 0 : index
    %4 = vector.load %arg3[%c0_3, %c0_4] : memref<16x128xbf16, #tpu.memory_space<vmem>>, vector<16x128xbf16>
    %cst = arith.constant dense<0.000000e+00> : vector<8x128xf32>
    %5 = tpu.matmul %1, %4, %cst {dimension_numbers = #tpu.dot_dimension_numbers<[1], [0], [0], [1], [0, 0, 1, 1], [], []>} : vector<8x16xbf16>, vector<16x128xbf16>, vector<8x128xf32> -> vector<8x128xf32>
    %c0_5 = arith.constant 0 : index
    %c0_6 = arith.constant 0 : index
    %6 = vector.load %arg4[%c0_5, %c0_6] : memref<8x128xbf16, #tpu.memory_space<vmem>>, vector<8x128xbf16>
    %cst_7 = arith.constant dense<0.000000e+00> : vector<8x128xf32>
    %7 = tpu.matmul %3, %6, %cst_7 {dimension_numbers = #tpu.dot_dimension_numbers<[1], [0], [0], [1], [0, 0, 1, 1], [], []>} : vector<8x8xbf16>, vector<8x128xbf16>, vector<8x128xf32> -> vector<8x128xf32>
    %8 = arith.addf %5, %7 : vector<8x128xf32>
    %c0_8 = arith.constant 0 : index
    %c0_9 = arith.constant 0 : index
    %9 = vector.load %arg5[%c0_8, %c0_9] : memref<1x128xf32, #tpu.memory_space<vmem>>, vector<1x128xf32>
    %10 = vector.broadcast %9 : vector<1x128xf32> to vector<8x128xf32>
    %11 = arith.addf %8, %10 : vector<8x128xf32>
    %cst_10 = arith.constant 0.000000e+00 : f32
    %12 = vector.broadcast %cst_10 : f32 to vector<8x128xf32>
    %13 = arith.maximumf %11, %12 : vector<8x128xf32>
    %14 = arith.truncf %13 : vector<8x128xf32> to vector<8x128xbf16>
    %c0_11 = arith.constant 0 : index
    %c0_12 = arith.constant 0 : index
    %15 = vector.load %arg6[%c0_11, %c0_12] : memref<128x128xbf16, #tpu.memory_space<vmem>>, vector<128x128xbf16>
    %cst_13 = arith.constant dense<0.000000e+00> : vector<8x128xf32>
    %16 = tpu.matmul %14, %15, %cst_13 {dimension_numbers = #tpu.dot_dimension_numbers<[1], [0], [0], [1], [0, 0, 1, 1], [], []>} : vector<8x128xbf16>, vector<128x128xbf16>, vector<8x128xf32> -> vector<8x128xf32>
    %c0_14 = arith.constant 0 : index
    %c0_15 = arith.constant 0 : index
    %17 = vector.load %arg7[%c0_14, %c0_15] : memref<1x128xf32, #tpu.memory_space<vmem>>, vector<1x128xf32>
    %18 = vector.broadcast %17 : vector<1x128xf32> to vector<8x128xf32>
    %19 = arith.addf %16, %18 : vector<8x128xf32>
    %cst_16 = arith.constant 0.000000e+00 : f32
    %20 = vector.broadcast %cst_16 : f32 to vector<8x128xf32>
    %21 = arith.maximumf %19, %20 : vector<8x128xf32>
    %22 = arith.truncf %21 : vector<8x128xf32> to vector<8x128xbf16>
    %c0_17 = arith.constant 0 : index
    %c0_18 = arith.constant 0 : index
    %23 = vector.load %arg8[%c0_17, %c0_18] : memref<1x128xbf16, #tpu.memory_space<vmem>>, vector<1x128xbf16>
    %cst_19 = arith.constant dense<0.000000e+00> : vector<1x8xf32>
    %24 = tpu.matmul %23, %22, %cst_19 {dimension_numbers = #tpu.dot_dimension_numbers<[1], [1], [0], [0], [0, 0, 1, 0], [], []>} : vector<1x128xbf16>, vector<8x128xbf16>, vector<1x8xf32> -> vector<1x8xf32>
    %c0_20 = arith.constant 0 : index
    %c0_21 = arith.constant 0 : index
    %25 = vector.load %arg9[%c0_20, %c0_21] : memref<1x1xf32, #tpu.memory_space<vmem>>, vector<1x1xf32>
    %26 = vector.broadcast %25 : vector<1x1xf32> to vector<1x8xf32>
    %27 = arith.addf %24, %26 : vector<1x8xf32>
    %c0_22 = arith.constant 0 : index
    %c0_23 = arith.constant 0 : index
    %28 = vector.load %arg10[%c0_22, %c0_23] : memref<1x8xf32, #tpu.memory_space<vmem>>, vector<1x8xf32>
    tpu.vector_store %arg10[%c0_22, %c0_23], %27 {strides = array<i32>} : memref<1x8xf32, #tpu.memory_space<vmem>>, vector<1x8xf32>,
    return
  }
  func.func @transform_0(%arg0: i32) -> (i32, i32) {
    %c0_i32 = arith.constant 0 : i32
    %c0_i32_0 = arith.constant 0 : i32
    return %arg0, %c0_i32 : i32, i32
  }
  func.func @transform_1(%arg0: i32) -> (i32, i32) {
    %c0_i32 = arith.constant 0 : i32
    %c0_i32_0 = arith.constant 0 : i32
    return %arg0, %c0_i32 : i32, i32
  }
  func.func @transform_2(%arg0: i32) -> (i32, i32) {
    %c0_i32 = arith.constant 0 : i32
    %c0_i32_0 = arith.constant 0 : i32
    %c0_i32_1 = arith.constant 0 : i32
    return %c0_i32, %c0_i32_0 : i32, i32
  }
  func.func @transform_3(%arg0: i32) -> (i32, i32) {
    %c0_i32 = arith.constant 0 : i32
    %c0_i32_0 = arith.constant 0 : i32
    %c0_i32_1 = arith.constant 0 : i32
    return %c0_i32, %c0_i32_0 : i32, i32
  }
  func.func @transform_4(%arg0: i32) -> (i32, i32) {
    %c0_i32 = arith.constant 0 : i32
    %c0_i32_0 = arith.constant 0 : i32
    %c0_i32_1 = arith.constant 0 : i32
    return %c0_i32, %c0_i32_0 : i32, i32
  }
  func.func @transform_5(%arg0: i32) -> (i32, i32) {
    %c0_i32 = arith.constant 0 : i32
    %c0_i32_0 = arith.constant 0 : i32
    %c0_i32_1 = arith.constant 0 : i32
    return %c0_i32, %c0_i32_0 : i32, i32
  }
  func.func @transform_6(%arg0: i32) -> (i32, i32) {
    %c0_i32 = arith.constant 0 : i32
    %c0_i32_0 = arith.constant 0 : i32
    %c0_i32_1 = arith.constant 0 : i32
    return %c0_i32, %c0_i32_0 : i32, i32
  }
  func.func @transform_7(%arg0: i32) -> (i32, i32) {
    %c0_i32 = arith.constant 0 : i32
    %c0_i32_0 = arith.constant 0 : i32
    %c0_i32_1 = arith.constant 0 : i32
    return %c0_i32, %c0_i32_0 : i32, i32
  }
  func.func @transform_8(%arg0: i32) -> (i32, i32) {
    %c0_i32 = arith.constant 0 : i32
    %c0_i32_0 = arith.constant 0 : i32
    %c0_i32_1 = arith.constant 0 : i32
    return %c0_i32, %c0_i32_0 : i32, i32
  }
  func.func @transform_9(%arg0: i32) -> (i32, i32) {
    %c0_i32 = arith.constant 0 : i32
    %c0_i32_0 = arith.constant 0 : i32
    return %c0_i32, %arg0 : i32, i32
  }
}

</mosaic_0001>

<llo_original>
// kernel: critic_forward.1
$region0: #{critic_forward.1}
  #allocation0 [shape = 'u32[]', space=smem, size = 0x4, offset = 0x4, fixed_abs, tag = 'smem constant byte address 0x4 - core index']
  #allocation1 [shape = 'u32[144,128]{1,0:T(1,128)}', space=vmem, size = 0x12000, scoped, tag = 'internal scratch']
  #allocation2 [shape = 'f32[1,1]{1,0:T(1,128)S(1)}', space=vmem, size = 0x200, scoped, tag = 'scoped memory for critic_forward.1']
  %s0 = inlined_call_operand.hbm [shape: f32[8,16], index: 0, kind: input, shape index: {}]
  %s1 = inlined_call_operand.hbm [shape: f32[8,8], index: 1, kind: input, shape index: {}]
  %s2 = inlined_call_operand.vmem [shape: bf16[16,128], index: 2, kind: input, shape index: {}]
  %s3 = inlined_call_operand.vmem [shape: bf16[8,128], index: 3, kind: input, shape index: {}]
  %s4 = inlined_call_operand.vmem [shape: f32[1,128], index: 4, kind: input, shape index: {}]
  %s5 = inlined_call_operand.hbm [shape: bf16[128,128], index: 5, kind: input, shape index: {}]
  %s6 = inlined_call_operand.vmem [shape: f32[1,128], index: 6, kind: input, shape index: {}]
  %s7 = inlined_call_operand.vmem [shape: bf16[1,128], index: 7, kind: input, shape index: {}]
  %s8 = inlined_call_operand.<no memory space> [shape: f32[1,1], index: 8, kind: input, shape index: {}]
  %s9 = inlined_call_operand.hbm [shape: f32[1,8], index: 9, kind: output, shape index: {}]
  %s10 = sld [smem:[#allocation0]]
  $region58: #{critic_forward.1} parent=0
    _
  %s12 = ssub.s32 1, %s10
  %s13 = scalar_select 0, %s12, %s10
  %v14 = vstv %s8
  %15 = vst [vmem:[#allocation2] sm:$0x1] %v14
  $region1: #{critic_forward.1} parent=0
    #allocation3 [shape = 'u8[4096]{0}', space=vmem, size = 0x1000, scoped, tag = 'input window, operand 0, single buffered']
    #allocation4 [shape = 's32[1]{0}', space=sflag, size = 0x4, scoped, tag = 'scoped memory for critic_forward.1']
    #allocation5 [shape = 's32[1]{0}', space=sflag, size = 0x4, scoped, tag = 'scoped memory for critic_forward.1']
    #allocation6 [shape = 'u8[4096]{0}', space=vmem, size = 0x1000, scoped, tag = 'input window, operand 1, single buffered']
    #allocation7 [shape = 's32[1]{0}', space=sflag, size = 0x4, scoped, tag = 'scoped memory for critic_forward.1']
    #allocation8 [shape = 'u8[32768]{0}', space=vmem, size = 0x8000, scoped, tag = 'input window, operand 5, single buffered']
    #allocation9 [shape = 'u8[512]{0}', space=vmem, size = 0x400, scoped, tag = 'output window, operand 0, single buffered']
    %16 = vsyncpa [#allocation4], 0
    %17 = vsyncpa [#allocation7], 0
    %18 = vsyncpa [#allocation5], 0
    // Predicated region
    $region2: #{critic_forward.1} parent=1 // pred_check
      _
    $region3: #{critic_forward.1} parent=1 // pred_check_branch
      %20 = sbr.rel (0) target = $region5
    $region4: #{critic_forward.1} parent=1 // pred_region
      %s22 = ssub.s32 128, 128
      %23 = vsyncadd [#allocation4], %s22
      %s25 = sshll.u32 [#allocation3], 4
      %s26 = int_to_ptr.vmem [resolvable:$true] %s25
      %28 = dma.hbm_to_vmem [thread:$0]  %s0, 128, %s26, [#allocation4]
    $region5: #{critic_forward.1} parent=1 // pred_fallthru
      _
    // Predicated region
    $region6: #{critic_forward.1} parent=1 // pred_check
      _
    $region7: #{critic_forward.1} parent=1 // pred_check_branch
      %30 = sbr.rel (0) target = $region9
    $region8: #{critic_forward.1} parent=1 // pred_region
      %s32 = ssub.s32 128, 128
      %33 = vsyncadd [#allocation7], %s32
      %s35 = sshll.u32 [#allocation6], 4
      %s36 = int_to_ptr.vmem [resolvable:$true] %s35
      %38 = dma.hbm_to_vmem [thread:$0]  %s1, 128, %s36, [#allocation7]
    $region9: #{critic_forward.1} parent=1 // pred_fallthru
      _
    // Predicated region
    $region10: #{critic_forward.1} parent=1 // pred_check
      _
    $region11: #{critic_forward.1} parent=1 // pred_check_branch
      %40 = sbr.rel (0) target = $region13
    $region12: #{critic_forward.1} parent=1 // pred_region
      _
    $region13: #{critic_forward.1} parent=1 // pred_fallthru
      _
    // Predicated region
    $region14: #{critic_forward.1} parent=1 // pred_check
      _
    $region15: #{critic_forward.1} parent=1 // pred_check_branch
      %42 = sbr.rel (0) target = $region17
    $region16: #{critic_forward.1} parent=1 // pred_region
      _
    $region17: #{critic_forward.1} parent=1 // pred_fallthru
      _
    // Predicated region
    $region18: #{critic_forward.1} parent=1 // pred_check
      _
    $region19: #{critic_forward.1} parent=1 // pred_check_branch
      %44 = sbr.rel (0) target = $region21
    $region20: #{critic_forward.1} parent=1 // pred_region
      _
    $region21: #{critic_forward.1} parent=1 // pred_fallthru
      _
    // Predicated region
    $region22: #{critic_forward.1} parent=1 // pred_check
      _
    $region23: #{critic_forward.1} parent=1 // pred_check_branch
      %46 = sbr.rel (0) target = $region25
    $region24: #{critic_forward.1} parent=1 // pred_region
      %s48 = ssub.s32 1024, 1024
      %49 = vsyncadd [#allocation7], %s48
      %s50 = sshll.u32 [#allocation8], 4
      %s51 = int_to_ptr.vmem [resolvable:$true] %s50
      %56 = dma.hbm_to_vmem [thread:$0]  %s5, 1024, %s51, [#allocation7], 64, 64, 4
    $region25: #{critic_forward.1} parent=1 // pred_fallthru
      _
    // Predicated region
    $region26: #{critic_forward.1} parent=1 // pred_check
      _
    $region27: #{critic_forward.1} parent=1 // pred_check_branch
      %58 = sbr.rel (0) target = $region29
    $region28: #{critic_forward.1} parent=1 // pred_region
      _
    $region29: #{critic_forward.1} parent=1 // pred_fallthru
      _
    // Predicated region
    $region30: #{critic_forward.1} parent=1 // pred_check
      _
    $region31: #{critic_forward.1} parent=1 // pred_check_branch
      %60 = sbr.rel (0) target = $region33
    $region32: #{critic_forward.1} parent=1 // pred_region
      _
    $region33: #{critic_forward.1} parent=1 // pred_fallthru
      _
    // Predicated region
    $region34: #{critic_forward.1} parent=1 // pred_check
      _
    $region35: #{critic_forward.1} parent=1 // pred_check_branch
      %62 = sbr.rel (0) target = $region37
    $region36: #{critic_forward.1} parent=1 // pred_region
      _
    $region37: #{critic_forward.1} parent=1 // pred_fallthru
      _
    // Predicated region
    $region38: #{critic_forward.1} parent=1 // pred_check
      _
    $region39: #{critic_forward.1} parent=1 // pred_check_branch
      %64 = sbr.rel (0) target = $region41
    $region40: #{critic_forward.1} parent=1 // pred_region
      %65 = dma.done [#allocation4], 128
    $region41: #{critic_forward.1} parent=1 // pred_fallthru
      _
    // Predicated region
    $region42: #{critic_forward.1} parent=1 // pred_check
      _
    $region43: #{critic_forward.1} parent=1 // pred_check_branch
      %67 = sbr.rel (0) target = $region45
    $region44: #{critic_forward.1} parent=1 // pred_region
      %68 = dma.done [#allocation7], 128
    $region45: #{critic_forward.1} parent=1 // pred_fallthru
      _
    // Predicated region
    $region46: #{critic_forward.1} parent=1 // pred_check
      _
    $region47: #{critic_forward.1} parent=1 // pred_check_branch
      %70 = sbr.rel (0) target = $region49
    $region48: #{critic_forward.1} parent=1 // pred_region
      %71 = dma.done [#allocation7], 1024
    $region49: #{critic_forward.1} parent=1 // pred_fallthru
      _
    %v73 = vld [vmem:[#allocation3] sm:$0xff]
    %v74 = vpack.c.bf16 %v73, %v73
    %v75 = vld [vmem:[#allocation6] sm:$0xff]
    %v76 = vpack.c.bf16 %v75, %v75
    %v77 = vld [vmem:[%s2] sm:$0xf]
    %v78 = vld [vmem:[%s2 + $0x4] sm:$0xf]
    %v79 = vld [vmem:[%s3] sm:$0xf]
    %vm80 = vcmask 64512
    %v82 = vsel %vm80, %v76, 0
    %vm84 = vcmask 1043456
    %v86 = vsel %vm84, %v79, 0
    %88 = vmatprep.subr.bf16.mxu0 0
    %89 = vmatpush1.bf16.msra.mxu0 %v86
    %90 = vmatprep.subr.bf16.mxu0 0
    %91 = vmatpush1.bf16.msra.mxu0 0
    %92 = vmatprep.subr.bf16.mxu0 0
    %93 = vmatpush1.bf16.msra.mxu0 0
    %94 = vmatprep.subr.bf16.mxu0 0
    %95 = vmatpush1.bf16.msra.mxu0 0
    %96 = vmatprep.subr.bf16.mxu0 0
    %97 = vmatpush1.bf16.msra.mxu0 0
    %98 = vmatprep.subr.bf16.mxu0 0
    %99 = vmatpush1.bf16.msra.mxu0 0
    %100 = vmatprep.subr.bf16.mxu0 0
    %101 = vmatpush1.bf16.msra.mxu0 0
    %102 = vmatprep.subr.bf16.mxu0 0
    %103 = vmatpush1.bf16.msra.mxu0 0
    %104 = vmatprep.subr.bf16.mxu0 0
    %105 = vmatpush1.bf16.msra.mxu0 0
    %106 = vmatprep.subr.bf16.mxu0 0
    %107 = vmatpush1.bf16.msra.mxu0 0
    %108 = vmatprep.subr.bf16.mxu0 0
    %109 = vmatpush1.bf16.msra.mxu0 0
    %110 = vmatprep.subr.bf16.mxu0 0
    %111 = vmatpush1.bf16.msra.mxu0 0
    %112 = vmatprep.subr.bf16.mxu0 0
    %113 = vmatpush1.bf16.msra.mxu0 0
    %114 = vmatprep.subr.bf16.mxu0 0
    %115 = vmatpush1.bf16.msra.mxu0 0
    %116 = vmatprep.subr.bf16.mxu0 0
    %117 = vmatpush1.bf16.msra.mxu0 0
    %118 = vmatprep.subr.bf16.mxu0 0
    %119 = vmatpush1.bf16.msra.mxu0 0
    %120 = vmatprep.mubr.bf16.mxu0 0
    %121 = vmatmul.mubr.bf16.gmra.mrb[0].mxu0 %v82
    %v122 = vpop.f32.mrb[0].mxu0
    %v123 = vadd.f32 0.0, %v122
    %v124 = vpop.f32.mrb[0].mxu0
    %v125 = vpop.f32.mrb[0].mxu0
    %v126 = vpop.f32.mrb[0].mxu0
    %127 = vdwg.mxu0
    %v130 = vunpack.c.l.b16 %v77
    %v131 = vunpack.c.l.b16 %v78
    %v132 = vpack.c.b16 %v131, %v130
    %vm134 = vcmask 130048
    %v136 = vsel %vm134, %v74, 0
    %138 = vmatprep.subr.bf16.mxu0 0
    %139 = vmatpush1.bf16.msra.mxu0 %v132
    %140 = vmatprep.subr.bf16.mxu0 0
    %141 = vmatpush1.bf16.msra.mxu0 0
    %142 = vmatprep.subr.bf16.mxu0 0
    %143 = vmatpush1.bf16.msra.mxu0 0
    %144 = vmatprep.subr.bf16.mxu0 0
    %145 = vmatpush1.bf16.msra.mxu0 0
    %146 = vmatprep.subr.bf16.mxu0 0
    %147 = vmatpush1.bf16.msra.mxu0 0
    %148 = vmatprep.subr.bf16.mxu0 0
    %149 = vmatpush1.bf16.msra.mxu0 0
    %150 = vmatprep.subr.bf16.mxu0 0
    %151 = vmatpush1.bf16.msra.mxu0 0
    %152 = vmatprep.subr.bf16.mxu0 0
    %153 = vmatpush1.bf16.msra.mxu0 0
    %154 = vmatprep.subr.bf16.mxu0 0
    %155 = vmatpush1.bf16.msra.mxu0 0
    %156 = vmatprep.subr.bf16.mxu0 0
    %157 = vmatpush1.bf16.msra.mxu0 0
    %158 = vmatprep.subr.bf16.mxu0 0
    %159 = vmatpush1.bf16.msra.mxu0 0
    %160 = vmatprep.subr.bf16.mxu0 0
    %161 = vmatpush1.bf16.msra.mxu0 0
    %162 = vmatprep.subr.bf16.mxu0 0
    %163 = vmatpush1.bf16.msra.mxu0 0
    %164 = vmatprep.subr.bf16.mxu0 0
    %165 = vmatpush1.bf16.msra.mxu0 0
    %166 = vmatprep.subr.bf16.mxu0 0
    %167 = vmatpush1.bf16.msra.mxu0 0
    %168 = vmatprep.subr.bf16.mxu0 0
    %169 = vmatpush1.bf16.msra.mxu0 0
    %170 = vmatprep.mubr.bf16.mxu0 0
    %171 = vmatmul.mubr.bf16.gmra.mrb[0].mxu0 %v136
    %v172 = vpop.f32.mrb[0].mxu0
    %v173 = vadd.f32 %v123, %v172
    %v174 = vpop.f32.mrb[0].mxu0
    %v175 = vpop.f32.mrb[0].mxu0
    %v176 = vpop.f32.mrb[0].mxu0
    %177 = vdwg.mxu0
    %v178 = vld [vmem:[%s4] sm:$0x1]
    %v180 = vlaneseq
    %v181 = vshrl.u32 %v180, 7
    %v182 = vsub.s32 0, %v181
    %v183 = vrot.slane %v178, %v182
    %v185 = vadd.f32 %v173, %v183
    %v186 = vmax.f32 %v185, 0.0
    %v187 = vpack.c.bf16 %v186, %v186
    %v188 = vld [vmem:[#allocation8] sm:$0xf]
    %v189 = vld [vmem:[#allocation8 + $0x4] sm:$0xf]
    %v190 = vld [vmem:[#allocation8 + $0x8] sm:$0xf]
    %v191 = vld [vmem:[#allocation8 + $0xc] sm:$0xf]
    %v192 = vld [vmem:[#allocation8 + $0x10] sm:$0xf]
    %v193 = vld [vmem:[#allocation8 + $0x14] sm:$0xf]
    %v194 = vld [vmem:[#allocation8 + $0x18] sm:$0xf]
    %v195 = vld [vmem:[#allocation8 + $0x1c] sm:$0xf]
    %v196 = vld [vmem:[#allocation8 + $0x20] sm:$0xf]
    %v197 = vld [vmem:[#allocation8 + $0x24] sm:$0xf]
    %v198 = vld [vmem:[#allocation8 + $0x28] sm:$0xf]
    %v199 = vld [vmem:[#allocation8 + $0x2c] sm:$0xf]
    %v200 = vld [vmem:[#allocation8 + $0x30] sm:$0xf]
    %v201 = vld [vmem:[#allocation8 + $0x34] sm:$0xf]
    %v202 = vld [vmem:[#allocation8 + $0x38] sm:$0xf]
    %v203 = vld [vmem:[#allocation8 + $0x3c] sm:$0xf]
    %v204 = vld [vmem:[%s6] sm:$0x1]
    %v206 = vlaneseq
    %v207 = vshrl.u32 %v206, 7
    %v208 = vsub.s32 0, %v207
    %v209 = vrot.slane %v204, %v208
    %v227 = vunpack.c.l.b16 %v188
    %v228 = vunpack.c.l.b16 %v189
    %v229 = vunpack.c.l.b16 %v190
    %v230 = vunpack.c.l.b16 %v191
    %v231 = vunpack.c.l.b16 %v192
    %v232 = vunpack.c.l.b16 %v193
    %v233 = vunpack.c.l.b16 %v194
    %v234 = vunpack.c.l.b16 %v195
    %v235 = vunpack.c.l.b16 %v196
    %v236 = vunpack.c.l.b16 %v197
    %v237 = vunpack.c.l.b16 %v198
    %v238 = vunpack.c.l.b16 %v199
    %v239 = vunpack.c.l.b16 %v200
    %v240 = vunpack.c.l.b16 %v201
    %v241 = vunpack.c.l.b16 %v202
    %v242 = vunpack.c.l.b16 %v203
    %v243 = vpack.c.b16 %v228, %v227
    %v244 = vpack.c.b16 %v230, %v229
    %v245 = vpack.c.b16 %v232, %v231
    %v246 = vpack.c.b16 %v234, %v233
    %v247 = vpack.c.b16 %v236, %v235
    %v248 = vpack.c.b16 %v238, %v237
    %v249 = vpack.c.b16 %v240, %v239
    %v250 = vpack.c.b16 %v242, %v241
    %259 = vmatprep.subr.bf16.mxu0 0
    %260 = vmatpush1.bf16.msra.mxu0 %v243
    %261 = vmatprep.subr.bf16.mxu0 0
    %262 = vmatpush1.bf16.msra.mxu0 %v244
    %263 = vmatprep.subr.bf16.mxu0 0
    %264 = vmatpush1.bf16.msra.mxu0 %v245
    %265 = vmatprep.subr.bf16.mxu0 0
    %266 = vmatpush1.bf16.msra.mxu0 %v246
    %267 = vmatprep.subr.bf16.mxu0 0
    %268 = vmatpush1.bf16.msra.mxu0 %v247
    %269 = vmatprep.subr.bf16.mxu0 0
    %270 = vmatpush1.bf16.msra.mxu0 %v248
    %271 = vmatprep.subr.bf16.mxu0 0
    %272 = vmatpush1.bf16.msra.mxu0 %v249
    %273 = vmatprep.subr.bf16.mxu0 0
    %274 = vmatpush1.bf16.msra.mxu0 %v250
    %275 = vmatprep.subr.bf16.mxu0 0
    %276 = vmatpush1.bf16.msra.mxu0 0
    %277 = vmatprep.subr.bf16.mxu0 0
    %278 = vmatpush1.bf16.msra.mxu0 0
    %279 = vmatprep.subr.bf16.mxu0 0
    %280 = vmatpush1.bf16.msra.mxu0 0
    %281 = vmatprep.subr.bf16.mxu0 0
    %282 = vmatpush1.bf16.msra.mxu0 0
    %283 = vmatprep.subr.bf16.mxu0 0
    %284 = vmatpush1.bf16.msra.mxu0 0
    %285 = vmatprep.subr.bf16.mxu0 0
    %286 = vmatpush1.bf16.msra.mxu0 0
    %287 = vmatprep.subr.bf16.mxu0 0
    %288 = vmatpush1.bf16.msra.mxu0 0
    %289 = vmatprep.subr.bf16.mxu0 0
    %290 = vmatpush1.bf16.msra.mxu0 0
    %291 = vmatprep.mubr.bf16.mxu0 0
    %292 = vmatmul.mubr.bf16.gmra.mrb[0].mxu0 %v187
    %v293 = vpop.f32.mrb[0].mxu0
    %v294 = vadd.f32 %v209, %v293
    %v295 = vpop.f32.mrb[0].mxu0
    %v296 = vpop.f32.mrb[0].mxu0
    %v297 = vpop.f32.mrb[0].mxu0
    %298 = vdwg.mxu0
    %v299 = vmax.f32 %v294, 0.0
    %v300 = vpack.c.bf16 %v299, %v299
    %v301 = vld [vmem:[%s7] sm:$0x1]
    %v302 = vld [vmem:[#allocation2] sm:$0x1]
    %304 = vset.pattern.permute.xlu0 0
    %305 = vperm.xlu0 %304, %v302
    %v306 = vpop.permute.xlu0 %305
    %v308 = vlaneseq
    %v309 = vshrl.u32 %v308, 7
    %v310 = vsub.s32 0, %v309
    %v311 = vrot.slane %v306, %v310
    %312 = vmatprep.subr.bf16.mxu0 0
    %313 = vmatpush1.bf16.xpose.msra.mxu0 %v300
    %314 = vmatprep.subr.bf16.mxu0 0
    %315 = vmatpush1.bf16.xpose.msra.mxu0 0
    %316 = vmatprep.subr.bf16.mxu0 0
    %317 = vmatpush1.bf16.xpose.msra.mxu0 0
    %318 = vmatprep.subr.bf16.mxu0 0
    %319 = vmatpush1.bf16.xpose.msra.mxu0 0
    %320 = vmatprep.subr.bf16.mxu0 0
    %321 = vmatpush1.bf16.xpose.msra.mxu0 0
    %322 = vmatprep.subr.bf16.mxu0 0
    %323 = vmatpush1.bf16.xpose.msra.mxu0 0
    %324 = vmatprep.subr.bf16.mxu0 0
    %325 = vmatpush1.bf16.xpose.msra.mxu0 0
    %326 = vmatprep.subr.bf16.mxu0 0
    %327 = vmatpush1.bf16.xpose.msra.mxu0 0
    %328 = vmatprep.subr.bf16.mxu0 0
    %329 = vmatpush1.bf16.xpose.msra.mxu0 0
    %330 = vmatprep.subr.bf16.mxu0 0
    %331 = vmatpush1.bf16.xpose.msra.mxu0 0
    %332 = vmatprep.subr.bf16.mxu0 0
    %333 = vmatpush1.bf16.xpose.msra.mxu0 0
    %334 = vmatprep.subr.bf16.mxu0 0
    %335 = vmatpush1.bf16.xpose.msra.mxu0 0
    %336 = vmatprep.subr.bf16.mxu0 0
    %337 = vmatpush1.bf16.xpose.msra.mxu0 0
    %338 = vmatprep.subr.bf16.mxu0 0
    %339 = vmatpush1.bf16.xpose.msra.mxu0 0
    %340 = vmatprep.subr.bf16.mxu0 0
    %341 = vmatpush1.bf16.xpose.msra.mxu0 0
    %342 = vmatprep.subr.bf16.mxu0 0
    %343 = vmatpush1.bf16.xpose.msra.mxu0 0
    %344 = vmatprep.mubr.bf16.mxu0 0
    %345 = vmatmul.mubr.bf16.gmra.mrb[0].mxu0 %v301
    %v346 = vpop.f32.mrb[0].mxu0
    %v347 = vadd.f32 %v311, %v346
    %v348 = vpop.f32.mrb[0].mxu0
    %v349 = vpop.f32.mrb[0].mxu0
    %v350 = vpop.f32.mrb[0].mxu0
    %351 = vdwg.mxu0
    %vm352 = vcmask 57344
    %353 = vst.msk [vmem:[#allocation9] sm:$0x1] %vm352, %v347
    // Predicated region
    $region50: #{critic_forward.1} parent=1 // pred_check
      _
    $region51: #{critic_forward.1} parent=1 // pred_check_branch
      %355 = sbr.rel (0) target = $region53
    $region52: #{critic_forward.1} parent=1 // pred_region
      %s357 = ssub.s32 16, 16
      %358 = vsyncadd [#allocation5], %s357
      %s360 = sshll.u32 [#allocation9], 4
      %s361 = int_to_ptr.vmem [resolvable:$true] %s360
      %363 = dma.vmem_to_hbm [thread:$0]  %s361, 16, %s9, [#allocation5]
    $region53: #{critic_forward.1} parent=1 // pred_fallthru
      _
    // Predicated region
    $region54: #{critic_forward.1} parent=1 // pred_check
      _
    $region55: #{critic_forward.1} parent=1 // pred_check_branch
      %365 = sbr.rel (0) target = $region57
    $region56: #{critic_forward.1} parent=1 // pred_region
      %366 = dma.done [#allocation5], 16
    $region57: #{critic_forward.1} parent=1 // pred_fallthru
      _
    %367 = vsyncpa [#allocation4], 1
    %368 = vsyncpa [#allocation7], 1
    %369 = vsyncpa [#allocation5], 1

</llo_original>
